<compile_context>
chip_gen: v7x
topology: tpu7x:2x2x1
jax: 0.10.0
libtpu: 0.0.40
codegen_flags: <defaults>
</compile_context>

<pallas_src>
import functools

import jax
import jax.numpy as jnp
import numpy as np
from jax import lax
from jax.experimental import pallas as pl
from jax.experimental.pallas import tpu as pltpu


def _round_up(x, m):
    return (x + m - 1) // m * m


def encoder_kernel(h_ref, w1_ref, w2_ref, out_ref, *, tk):
    # h_ref:   (NH, hop)  hop-rows of the padded signal for this batch element
    #                     (constant index over the K-tile axis -> no re-DMA).
    # w1_ref:  (N, hop)   first  half of the Conv1d basis W[:, :hop] (resident)
    # w2_ref:  (N, hop)   second half of the Conv1d basis W[:, hop:] (resident)
    # out_ref: (N, tk)    relu(W @ frames^T) tile, lane-dense over K.
    i = pl.program_id(1)
    k0 = pl.multiple_of(i * tk, tk)

    # Frames [k0, k0+tk) need hop-rows [k0, k0+tk].  Load one aligned chunk
    # (tk + 8 rows) and take two statically-offset views of it (the in-VMEM
    # sublane shift rides the XLU; no HBM cost).
    chunk = h_ref[pl.ds(k0, tk + 8), :]          # (tk + 8, hop)
    first = chunk[:tk, :]                        # hop-row k     of frame k
    second = chunk[1:tk + 1, :]                  # hop-row k + 1 of frame k

    # out[n, t] = sum_c w1[n,c]*first[t,c] + sum_c w2[n,c]*second[t,c]
    # (q @ k.T style contraction -> result already in (N, TK) orientation)
    dn = (((1,), (1,)), ((), ()))                # contract the hop dims
    acc = lax.dot_general(w1_ref[...], first, dn,
                          preferred_element_type=jnp.float32)
    acc = acc + lax.dot_general(w2_ref[...], second, dn,
                                preferred_element_type=jnp.float32)
    out_ref[...] = jnp.maximum(acc, 0.0).astype(out_ref.dtype)


def encoder_forward(x, weight, L, *, tile_k=2048):
    """ConvTasNet encoder forward.

    x:      [B, 1, T] float32 mixture
    weight: [N, 1, L] Conv1d weight (out_channels, in_channels=1, L)
    Returns mixture_w: [B, N, K], K = (T - L) // (L // 2) + 1.
    """
    B, C, T = x.shape
    assert C == 1
    assert L % 2 == 0, "Encoder uses stride = L // 2; even L expected"
    # TODO(synk): odd L (stride that does not split the window into two equal
    # hops) would need a different frame decomposition; ConvTasNet uses even L.
    N = weight.shape[0]
    hop = L // 2
    K = (T - L) // hop + 1
    assert K >= 1

    # --- K tiling: big lane-aligned tiles; ragged final tile is masked -------
    nt = -(-K // tile_k)                       # number of K tiles
    tk = _round_up(-(-K // nt), 128)           # frames per grid step

    # --- stage the signal as hop-rows (pure reshape, no gather) --------------
    nh = nt * tk + 8                           # hop rows incl. tail slack
    need = nh * hop
    sig = x[:, 0, :]
    if T >= need:
        sig_p = sig[:, :need]
    else:
        sig_p = jnp.pad(sig, ((0, 0), (0, need - T)))
    h = sig_p.reshape(B, nh, hop)

    w = weight[:, 0, :].astype(x.dtype)        # (N, L)
    w1 = w[:, :hop]                            # (N, hop)
    w2 = w[:, hop:]                            # (N, hop)

    kernel = functools.partial(encoder_kernel, tk=tk)

    out = pl.pallas_call(
        kernel,
        out_shape=jax.ShapeDtypeStruct((B, N, K), x.dtype),
        grid_spec=pltpu.PrefetchScalarGridSpec(
            num_scalar_prefetch=0,
            grid=(B, nt),
            in_specs=[
                # Whole per-batch hop-row array, resident across the K axis.
                pl.BlockSpec((None, nh, hop), lambda b, i: (b, 0, 0)),
                # ~4 KB weight halves, resident across the whole grid.
                pl.BlockSpec((N, hop), lambda b, i: (0, 0)),
                pl.BlockSpec((N, hop), lambda b, i: (0, 0)),
            ],
            # Exact-K output; Pallas masks the out-of-bounds tail of the last
            # tile, so no post-kernel slice pass over the result is needed.
            out_specs=pl.BlockSpec((None, N, tk), lambda b, i: (b, 0, i)),
        ),
        compiler_params=pltpu.CompilerParams(
            dimension_semantics=("parallel", "parallel"),
            vmem_limit_bytes=32 * 1024 * 1024,
        ),
    )(h, w1, w2)

    return out


if __name__ == "__main__":
    # Small, TPU-friendly shapes consistent with the module:
    L = 16           # kernel_size
    N = 128          # number of encoder basis signals
    stride = L // 2  # = 8
    B = 2
    T = 264          # gives K = (264 - 16) // 8 + 1 = 32

    key = jax.random.PRNGKey(0)
    kx, kw = jax.random.split(key)
    x = jax.random.normal(kx, (B, 1, T), dtype=jnp.float32)
    weight = jax.random.normal(kw, (N, 1, L), dtype=jnp.float32) * 0.1

    out = encoder_forward(x, weight, L)
    out = jax.block_until_ready(out)

    # Independent reference using lax conv (NCW layout, VALID padding, no bias)
    ref = lax.conv_general_dilated(
        x, weight, window_strides=(stride,), padding="VALID",
        dimension_numbers=("NCH", "OIH", "NCH"))
    ref = jnp.maximum(ref, 0.0)

    np.testing.assert_allclose(np.asarray(out), np.asarray(ref),
                               rtol=1e-5, atol=1e-5)
    assert out.shape == (B, N, (T - L) // stride + 1)
    print("KERNEL_OK")
</pallas_src>

<mosaic_0001>
module attributes {stable_mosaic.version = 11 : i64} {
  func.func @encoder_kernel(%arg0: i32, %arg1: i32, %arg2: memref<1x136x8xf32, #tpu.memory_space<vmem>>, %arg3: memref<128x8xf32, #tpu.memory_space<vmem>>, %arg4: memref<128x8xf32, #tpu.memory_space<vmem>>, %arg5: memref<1x128x128xf32, #tpu.memory_space<vmem>>) attributes {dimension_semantics = [#tpu.dimension_semantics<parallel>, #tpu.dimension_semantics<parallel>], iteration_bounds = array<i64: 2, 1>, scalar_prefetch = 0 : i64, scratch_operands = 0 : i64, tpu.core_type = #tpu.core_type<tc>, window_params = [{transform_indices = @transform_0, window_bounds = array<i64: 1, 136, 8>}, {pipeline_mode = #tpu.pipeline_mode<synchronous>, transform_indices = @transform_1, window_bounds = array<i64: 128, 8>}, {pipeline_mode = #tpu.pipeline_mode<synchronous>, transform_indices = @transform_2, window_bounds = array<i64: 128, 8>}, {transform_indices = @transform_3, window_bounds = array<i64: 1, 128, 128>}]} {
    %c128_i32 = arith.constant 128 : i32
    %0 = arith.muli %arg1, %c128_i32 : i32
    %1 = tpu.assume_multiple %0, 128 : i32
    %c0 = arith.constant 0 : index
    %2 = arith.index_cast %1 : i32 to index
    %c0_0 = arith.constant 0 : index
    %3 = vector.load %arg2[%c0, %2, %c0_0] : memref<1x136x8xf32, #tpu.memory_space<vmem>>, vector<1x136x8xf32>
    %4 = vector.shape_cast %3 : vector<1x136x8xf32> to vector<136x8xf32>
    %5 = vector.extract_strided_slice %4 {offsets = [0, 0], sizes = [128, 8], strides = [1, 1]} : vector<136x8xf32> to vector<128x8xf32>
    %6 = vector.extract_strided_slice %4 {offsets = [1, 0], sizes = [128, 8], strides = [1, 1]} : vector<136x8xf32> to vector<128x8xf32>
    %c0_1 = arith.constant 0 : index
    %c0_2 = arith.constant 0 : index
    %7 = vector.load %arg3[%c0_1, %c0_2] : memref<128x8xf32, #tpu.memory_space<vmem>>, vector<128x8xf32>
    %cst = arith.constant dense<0.000000e+00> : vector<128x128xf32>
    %8 = tpu.matmul %7, %5, %cst {dimension_numbers = #tpu.dot_dimension_numbers<[1], [1], [0], [0], [0, 0, 1, 0], [], []>} : vector<128x8xf32>, vector<128x8xf32>, vector<128x128xf32> -> vector<128x128xf32>
    %c0_3 = arith.constant 0 : index
    %c0_4 = arith.constant 0 : index
    %9 = vector.load %arg4[%c0_3, %c0_4] : memref<128x8xf32, #tpu.memory_space<vmem>>, vector<128x8xf32>
    %cst_5 = arith.constant dense<0.000000e+00> : vector<128x128xf32>
    %10 = tpu.matmul %9, %6, %cst_5 {dimension_numbers = #tpu.dot_dimension_numbers<[1], [1], [0], [0], [0, 0, 1, 0], [], []>} : vector<128x8xf32>, vector<128x8xf32>, vector<128x128xf32> -> vector<128x128xf32>
    %11 = arith.addf %8, %10 : vector<128x128xf32>
    %cst_6 = arith.constant 0.000000e+00 : f32
    %12 = vector.broadcast %cst_6 : f32 to vector<128x128xf32>
    %13 = arith.maximumf %11, %12 : vector<128x128xf32>
    %c0_7 = arith.constant 0 : index
    %c0_8 = arith.constant 0 : index
    %c0_9 = arith.constant 0 : index
    %14 = vector.load %arg5[%c0_7, %c0_8, %c0_9] : memref<1x128x128xf32, #tpu.memory_space<vmem>>, vector<1x128x128xf32>
    %15 = vector.shape_cast %14 : vector<1x128x128xf32> to vector<128x128xf32>
    %16 = vector.shape_cast %13 : vector<128x128xf32> to vector<1x128x128xf32>
    tpu.vector_store %arg5[%c0_7, %c0_8, %c0_9], %16 {strides = array<i32>} : memref<1x128x128xf32, #tpu.memory_space<vmem>>, vector<1x128x128xf32>,
    return
  }
  func.func @transform_0(%arg0: i32, %arg1: i32) -> (i32, i32, i32) {
    %c0_i32 = arith.constant 0 : i32
    %c0_i32_0 = arith.constant 0 : i32
    %c0_i32_1 = arith.constant 0 : i32
    return %arg0, %c0_i32, %c0_i32_0 : i32, i32, i32
  }
  func.func @transform_1(%arg0: i32, %arg1: i32) -> (i32, i32) {
    %c0_i32 = arith.constant 0 : i32
    %c0_i32_0 = arith.constant 0 : i32
    %c0_i32_1 = arith.constant 0 : i32
    return %c0_i32, %c0_i32_0 : i32, i32
  }
  func.func @transform_2(%arg0: i32, %arg1: i32) -> (i32, i32) {
    %c0_i32 = arith.constant 0 : i32
    %c0_i32_0 = arith.constant 0 : i32
    %c0_i32_1 = arith.constant 0 : i32
    return %c0_i32, %c0_i32_0 : i32, i32
  }
  func.func @transform_3(%arg0: i32, %arg1: i32) -> (i32, i32, i32) {
    %c0_i32 = arith.constant 0 : i32
    %c0_i32_0 = arith.constant 0 : i32
    return %arg0, %c0_i32, %arg1 : i32, i32, i32
  }
}

</mosaic_0001>

<llo_original>
// kernel: tpu_custom_call.1
$region0: #{tpu_custom_call.1}
  #allocation0 [shape = 'u32[]', space=smem, size = 0x4, offset = 0x4, fixed_abs, tag = 'smem constant byte address 0x4 - core index']
  #allocation1 [shape = 'u32[144,128]{1,0:T(1,128)}', space=vmem, size = 0x12000, scoped, tag = 'internal scratch']
  %s0 = inlined_call_operand.vmem [shape: f32[2,136,8], index: 0, kind: input, shape index: {}]
  %s1 = inlined_call_operand.vmem [shape: f32[128,8], index: 1, kind: input, shape index: {}]
  %s2 = inlined_call_operand.vmem [shape: f32[128,8], index: 2, kind: input, shape index: {}]
  %s3 = inlined_call_operand.vmem [shape: f32[2,128,32], index: 3, kind: output, shape index: {}]
  %s4 = sld [smem:[#allocation0]]
  $region45: #{tpu_custom_call.1} parent=0
    _
  %s6 = ssub.s32 1, %s4
  %s7 = scalar_select 0, %s6, %s4
  loop: start=0, step=1, limit=4
  $region2: #{tpu_custom_call.1} parent=0 // loop_pre_header
    _
  $region3: #{tpu_custom_call.1} parent=0 // loop_header
    %s9 = sphi 0, %s13
    %p10 = scmp.ge.s32.totalorder %s9, 4
    %s16 = sphi 0, %s28
    %s17 = sphi 0, %s24
    %s18 = sphi 0, %s16
    %s19 = sphi 0, %s17
    %s20 = sphi 0, %s18
    %s21 = sphi 0, %s19
    %s31 = sphi 0, %s33
    %s34 = sphi 0, %s31
    %s35 = sphi 0, %s34
    %s51 = sphi 0, %s35
    %s55 = sphi 0, %s55
    %s57 = sphi 0, %s55
    %s58 = sphi 0, %s57
    %s72 = sphi 0, %s58
    %s76 = sphi 0, %s76
    %s78 = sphi 0, %s76
    %s79 = sphi 0, %s78
    %s93 = sphi 0, %s79
    %s101 = sphi 0, %s103
    %s104 = sphi 0, %s101
    %s105 = sphi 0, %s104
    %s121 = sphi 0, %s105
  $region4: #{tpu_custom_call.1} parent=0 // loop_header_branch
    %12 = sbr.rel (%p10) target = $region8
  $region5: #{tpu_custom_call.1} parent=0 // loop_body
    %s14 = ssub.s32 %s9, 1
    %s15 = ssub.s32 %s9, 2
    %s22 = sadd.s32 1, %s17
    %p23 = scmp.ge.s32.totalorder %s22, 1
    %s24 = scalar_select %p23, 0, %s22
    %s25 = sadd.s32 1, %s16
    %s26 = scalar_select %p23, %s25, %s16
    %p27 = scmp.ge.s32.totalorder %s26, 2
    %s28 = scalar_select %p27, 0, %s26
    %s29 = ssub.s32 %s16, %s28
    %p30 = scmp.eq.s32.totalorder %s29, 0
    %s32 = sadd.s32 %s31, 1
    %s33 = scalar_select %p30, %s31, %s32
    %p36 = pneg %p30
    %p37 = scmp.eq.s32.totalorder %s9, 1
    %p38 = por %p36, %p37
    %p39 = scmp.ne.s32.totalorder %s31, %s34
    %p40 = scmp.eq.s32.totalorder %s9, 0
    %p41 = por %p39, %p40
    %p42 = scmp.ne.s32.totalorder %s31, %s34
    %p43 = scmp.eq.s32.totalorder %s14, 1
    %p44 = por %p42, %p43
    %p45 = scmp.ne.s32.totalorder %s34, %s35
    %p46 = scmp.eq.s32.totalorder %s14, 0
    %p47 = por %p45, %p46
    %p48 = scmp.ne.s32.totalorder %s34, %s35
    %p49 = scmp.eq.s32.totalorder %s15, 1
    %p50 = por %p48, %p49
    %p52 = scmp.ne.s32.totalorder %s35, %s51
    %p53 = scmp.eq.s32.totalorder %s15, 0
    %p54 = por %p52, %p53
    %s56 = sadd.s32 %s55, 1
    %p59 = scmp.eq.s32.totalorder %s9, 1
    %p60 = scmp.ne.s32.totalorder %s55, %s57
    %p61 = scmp.eq.s32.totalorder %s9, 0
    %p62 = por %p60, %p61
    %p63 = scmp.ne.s32.totalorder %s55, %s57
    %p64 = scmp.eq.s32.totalorder %s14, 1
    %p65 = por %p63, %p64
    %p66 = scmp.ne.s32.totalorder %s57, %s58
    %p67 = scmp.eq.s32.totalorder %s14, 0
    %p68 = por %p66, %p67
    %p69 = scmp.ne.s32.totalorder %s57, %s58
    %p70 = scmp.eq.s32.totalorder %s15, 1
    %p71 = por %p69, %p70
    %p73 = scmp.ne.s32.totalorder %s58, %s72
    %p74 = scmp.eq.s32.totalorder %s15, 0
    %p75 = por %p73, %p74
    %s77 = sadd.s32 %s76, 1
    %p80 = scmp.eq.s32.totalorder %s9, 1
    %p81 = scmp.ne.s32.totalorder %s76, %s78
    %p82 = scmp.eq.s32.totalorder %s9, 0
    %p83 = por %p81, %p82
    %p84 = scmp.ne.s32.totalorder %s76, %s78
    %p85 = scmp.eq.s32.totalorder %s14, 1
    %p86 = por %p84, %p85
    %p87 = scmp.ne.s32.totalorder %s78, %s79
    %p88 = scmp.eq.s32.totalorder %s14, 0
    %p89 = por %p87, %p88
    %p90 = scmp.ne.s32.totalorder %s78, %s79
    %p91 = scmp.eq.s32.totalorder %s15, 1
    %p92 = por %p90, %p91
    %p94 = scmp.ne.s32.totalorder %s79, %s93
    %p95 = scmp.eq.s32.totalorder %s15, 0
    %p96 = por %p94, %p95
    %s97 = ssub.s32 %s16, %s28
    %s98 = ssub.s32 %s17, %s24
    %s99 = sor.u32 %s97, %s98
    %p100 = scmp.eq.s32.totalorder %s99, 0
    %s102 = sadd.s32 %s101, 1
    %s103 = scalar_select %p100, %s101, %s102
    %p106 = pneg %p100
    %p107 = scmp.eq.s32.totalorder %s9, 1
    %p108 = por %p106, %p107
    %p109 = scmp.ne.s32.totalorder %s101, %s104
    %p110 = scmp.eq.s32.totalorder %s9, 0
    %p111 = por %p109, %p110
    %p112 = scmp.ne.s32.totalorder %s101, %s104
    %p113 = scmp.eq.s32.totalorder %s14, 1
    %p114 = por %p112, %p113
    %p115 = scmp.ne.s32.totalorder %s104, %s105
    %p116 = scmp.eq.s32.totalorder %s14, 0
    %p117 = por %p115, %p116
    %p118 = scmp.ne.s32.totalorder %s104, %s105
    %p119 = scmp.eq.s32.totalorder %s15, 1
    %p120 = por %p118, %p119
    %p122 = scmp.ne.s32.totalorder %s105, %s121
    %p123 = scmp.eq.s32.totalorder %s15, 0
    %p124 = por %p122, %p123
    %p125 = scmp.le.s32.totalorder 1, %s9
    %p126 = scmp.lt.s32.totalorder %s9, 3
    %p127 = pnand %p125, %p126
    %p128 = pneg %p127
    // Predicated region
    $region9: #{tpu_custom_call.1} parent=5 // pred_check
      _
    $region10: #{tpu_custom_call.1} parent=5 // pred_check_branch
      %130 = sbr.rel (%p127) target = $region12
    $region11: #{tpu_custom_call.1} parent=5 // pred_region
      %s131 = ssub.s32 %s9, 1
      // Predicated region
      $region13: #{tpu_custom_call.1} parent=11 // pred_check
        %p132 = pneg %p68
      $region14: #{tpu_custom_call.1} parent=11 // pred_check_branch
        %134 = sbr.rel (%p132) target = $region16
      $region15: #{tpu_custom_call.1} parent=11 // pred_region
        _
      $region16: #{tpu_custom_call.1} parent=11 // pred_fallthru
        _
      // Predicated region
      $region17: #{tpu_custom_call.1} parent=11 // pred_check
        %p135 = pneg %p89
      $region18: #{tpu_custom_call.1} parent=11 // pred_check_branch
        %137 = sbr.rel (%p135) target = $region20
      $region19: #{tpu_custom_call.1} parent=11 // pred_region
        _
      $region20: #{tpu_custom_call.1} parent=11 // pred_fallthru
        _
    $region12: #{tpu_custom_call.1} parent=5 // pred_fallthru
      _
    %p138 = scmp.lt.s32.totalorder %s9, 2
    // Predicated region
    $region21: #{tpu_custom_call.1} parent=5 // pred_check
      %p139 = pneg %p138
    $region22: #{tpu_custom_call.1} parent=5 // pred_check_branch
      %141 = sbr.rel (%p139) target = $region24
    $region23: #{tpu_custom_call.1} parent=5 // pred_region
      // Predicated region
      $region25: #{tpu_custom_call.1} parent=23 // pred_check
        %p142 = pneg %p41
      $region26: #{tpu_custom_call.1} parent=23 // pred_check_branch
        %144 = sbr.rel (%p142) target = $region28
      $region27: #{tpu_custom_call.1} parent=23 // pred_region
        %p145 = scmp.lt.s32.totalorder %s16, 1
        %s146 = scalar_select %p145, %s16, 1
        %s147 = smul.addr %s146, 17
        %s148 = smul.addr %s147, 8
        %s149 = scalar_lea.vmem %s0, %s148
      $region28: #{tpu_custom_call.1} parent=23 // pred_fallthru
        _
    $region24: #{tpu_custom_call.1} parent=5 // pred_fallthru
      _
    %p150 = scmp.le.s32.totalorder 1, %s9
    %p151 = scmp.lt.s32.totalorder %s9, 3
    %p152 = pnand %p150, %p151
    %p153 = pneg %p152
    // Predicated region
    $region29: #{tpu_custom_call.1} parent=5 // pred_check
      _
    $region30: #{tpu_custom_call.1} parent=5 // pred_check_branch
      %155 = sbr.rel (%p152) target = $region32
    $region31: #{tpu_custom_call.1} parent=5 // pred_region
      %s156 = ssub.s32 %s9, 1
      %p157 = scmp.lt.s32.totalorder %s18, 1
      %s158 = scalar_select %p157, %s18, 1
      %s159 = smul.addr %s158, 17
      %s160 = smul.addr %s159, 8
      %s161 = scalar_lea.vmem %s0, %s160
      %p162 = pneg %p47
      %p163 = pneg %p44
      %p164 = pneg %p68
      %p165 = pneg %p65
      %p166 = pneg %p89
      %p167 = pneg %p86
      %p168 = pneg %p117
      %p169 = pneg %p114
      %p170 = scmp.lt.s32.totalorder %s18, 1
      %s171 = scalar_select %p170, %s18, 1
      %p172 = scmp.lt.s32.totalorder %s19, 0
      %s173 = scalar_select %p172, %s19, 0
      %s174 = smul.addr %s171, 16
      %s175 = sadd.s32 %s173, %s174
      %s176 = smul.addr %s175, 8
      %s177 = scalar_lea.vmem %s3, %s176
      %p178 = scmp.lt.s32.totalorder %s18, 1
      %s179 = scalar_select %p178, %s18, 1
      %s180 = smul.addr %s179, 17
      %s181 = smul.addr %s180, 8
      %s182 = scalar_lea.vmem %s0, %s181
      %p183 = scmp.lt.s32.totalorder %s18, 1
      %s184 = scalar_select %p183, %s18, 1
      %p185 = scmp.lt.s32.totalorder %s19, 0
      %s186 = scalar_select %p185, %s19, 0
      %s187 = smul.addr %s184, 16
      %s188 = sadd.s32 %s186, %s187
      %s189 = smul.addr %s188, 8
      %s190 = scalar_lea.vmem %s3, %s189
      %s191 = smul.u32 %s19, 128
      %s192 = scalar_lea.vmem %s182, %s191
      %v193 = vld [vmem:[%s192] sm:$0xff]
      %v194 = vld [vmem:[%s192 + $0x8] sm:$0xff]
      %v195 = vld [vmem:[%s192 + $0x10] sm:$0xff]
      %v196 = vld [vmem:[%s192 + $0x18] sm:$0xff]
      %v197 = vld [vmem:[%s192 + $0x20] sm:$0xff]
      %v198 = vld [vmem:[%s192 + $0x28] sm:$0xff]
      %v199 = vld [vmem:[%s192 + $0x30] sm:$0xff]
      %v200 = vld [vmem:[%s192 + $0x38] sm:$0xff]
      %v201 = vld [vmem:[%s192 + $0x40] sm:$0xff]
      %v202 = vld [vmem:[%s192 + $0x48] sm:$0xff]
      %v203 = vld [vmem:[%s192 + $0x50] sm:$0xff]
      %v204 = vld [vmem:[%s192 + $0x58] sm:$0xff]
      %v205 = vld [vmem:[%s192 + $0x60] sm:$0xff]
      %v206 = vld [vmem:[%s192 + $0x68] sm:$0xff]
      %v207 = vld [vmem:[%s192 + $0x70] sm:$0xff]
      %v208 = vld [vmem:[%s192 + $0x78] sm:$0xff]
      %v209 = vld [vmem:[%s192 + $0x80] sm:$0xff]
      %v210 = vld [vmem:[%s1] sm:$0xff]
      %v211 = vld [vmem:[%s1 + $0x8] sm:$0xff]
      %v212 = vld [vmem:[%s1 + $0x10] sm:$0xff]
      %v213 = vld [vmem:[%s1 + $0x18] sm:$0xff]
      %v214 = vld [vmem:[%s1 + $0x20] sm:$0xff]
      %v215 = vld [vmem:[%s1 + $0x28] sm:$0xff]
      %v216 = vld [vmem:[%s1 + $0x30] sm:$0xff]
      %v217 = vld [vmem:[%s1 + $0x38] sm:$0xff]
      %v218 = vld [vmem:[%s1 + $0x40] sm:$0xff]
      %v219 = vld [vmem:[%s1 + $0x48] sm:$0xff]
      %v220 = vld [vmem:[%s1 + $0x50] sm:$0xff]
      %v221 = vld [vmem:[%s1 + $0x58] sm:$0xff]
      %v222 = vld [vmem:[%s1 + $0x60] sm:$0xff]
      %v223 = vld [vmem:[%s1 + $0x68] sm:$0xff]
      %v224 = vld [vmem:[%s1 + $0x70] sm:$0xff]
      %v225 = vld [vmem:[%s1 + $0x78] sm:$0xff]
      %v226 = vld [vmem:[%s2] sm:$0xff]
      %v227 = vld [vmem:[%s2 + $0x8] sm:$0xff]
      %v228 = vld [vmem:[%s2 + $0x10] sm:$0xff]
      %v229 = vld [vmem:[%s2 + $0x18] sm:$0xff]
      %v230 = vld [vmem:[%s2 + $0x20] sm:$0xff]
      %v231 = vld [vmem:[%s2 + $0x28] sm:$0xff]
      %v232 = vld [vmem:[%s2 + $0x30] sm:$0xff]
      %v233 = vld [vmem:[%s2 + $0x38] sm:$0xff]
      %v234 = vld [vmem:[%s2 + $0x40] sm:$0xff]
      %v235 = vld [vmem:[%s2 + $0x48] sm:$0xff]
      %v236 = vld [vmem:[%s2 + $0x50] sm:$0xff]
      %v237 = vld [vmem:[%s2 + $0x58] sm:$0xff]
      %v238 = vld [vmem:[%s2 + $0x60] sm:$0xff]
      %v239 = vld [vmem:[%s2 + $0x68] sm:$0xff]
      %v240 = vld [vmem:[%s2 + $0x70] sm:$0xff]
      %v241 = vld [vmem:[%s2 + $0x78] sm:$0xff]
      %vm259 = vcmask 1046528
      %v260 = vrot.slane %v193, 1
      %v261 = vrot.slane %v194, 1
      %v262 = vsel %vm259, %v260, %v261
      %v263 = vrot.slane %v195, 1
      %v264 = vsel %vm259, %v261, %v263
      %v265 = vrot.slane %v196, 1
      %v266 = vsel %vm259, %v263, %v265
      %v267 = vrot.slane %v197, 1
      %v268 = vsel %vm259, %v265, %v267
      %v269 = vrot.slane %v198, 1
      %v270 = vsel %vm259, %v267, %v269
      %v271 = vrot.slane %v199, 1
      %v272 = vsel %vm259, %v269, %v271
      %v273 = vrot.slane %v200, 1
      %v274 = vsel %vm259, %v271, %v273
      %v275 = vrot.slane %v201, 1
      %v276 = vsel %vm259, %v273, %v275
      %v277 = vrot.slane %v202, 1
      %v278 = vsel %vm259, %v275, %v277
      %v279 = vrot.slane %v203, 1
      %v280 = vsel %vm259, %v277, %v279
      %v281 = vrot.slane %v204, 1
      %v282 = vsel %vm259, %v279, %v281
      %v283 = vrot.slane %v205, 1
      %v284 = vsel %vm259, %v281, %v283
      %v285 = vrot.slane %v206, 1
      %v286 = vsel %vm259, %v283, %v285
      %v287 = vrot.slane %v207, 1
      %v288 = vsel %vm259, %v285, %v287
      %v289 = vrot.slane %v208, 1
      %v290 = vsel %vm259, %v287, %v289
      %v291 = vrot.slane %v209, 1
      %v292 = vsel %vm259, %v289, %v291
      %vm293 = vcmask 64512
      %v295 = vsel %vm293, %v226, 0
      %v298 = vsel %vm293, %v227, 0
      %v301 = vsel %vm293, %v228, 0
      %v304 = vsel %vm293, %v229, 0
      %v307 = vsel %vm293, %v230, 0
      %v310 = vsel %vm293, %v231, 0
      %v313 = vsel %vm293, %v232, 0
      %v316 = vsel %vm293, %v233, 0
      %v319 = vsel %vm293, %v234, 0
      %v322 = vsel %vm293, %v235, 0
      %v325 = vsel %vm293, %v236, 0
      %v328 = vsel %vm293, %v237, 0
      %v331 = vsel %vm293, %v238, 0
      %v334 = vsel %vm293, %v239, 0
      %v337 = vsel %vm293, %v240, 0
      %v340 = vsel %vm293, %v241, 0
      %v342 = vsel %vm293, %v262, 0
      %v344 = vsel %vm293, %v264, 0
      %v346 = vsel %vm293, %v266, 0
      %v348 = vsel %vm293, %v268, 0
      %v350 = vsel %vm293, %v270, 0
      %v352 = vsel %vm293, %v272, 0
      %v354 = vsel %vm293, %v274, 0
      %v356 = vsel %vm293, %v276, 0
      %v358 = vsel %vm293, %v278, 0
      %v360 = vsel %vm293, %v280, 0
      %v362 = vsel %vm293, %v282, 0
      %v364 = vsel %vm293, %v284, 0
      %v366 = vsel %vm293, %v286, 0
      %v368 = vsel %vm293, %v288, 0
      %v370 = vsel %vm293, %v290, 0
      %v372 = vsel %vm293, %v292, 0
      %374 = vmatprep.subr.mxu0 0.0
      %375 = vmatpush1.xpose.msra.mxu0 %v342
      %376 = vmatprep.subr.mxu0 0.0
      %377 = vmatpush1.xpose.msra.mxu0 %v344
      %378 = vmatprep.subr.mxu0 0.0
      %379 = vmatpush1.xpose.msra.mxu0 %v346
      %380 = vmatprep.subr.mxu0 0.0
      %381 = vmatpush1.xpose.msra.mxu0 %v348
      %382 = vmatprep.subr.mxu0 0.0
      %383 = vmatpush1.xpose.msra.mxu0 %v350
      %384 = vmatprep.subr.mxu0 0.0
      %385 = vmatpush1.xpose.msra.mxu0 %v352
      %386 = vmatprep.subr.mxu0 0.0
      %387 = vmatpush1.xpose.msra.mxu0 %v354
      %388 = vmatprep.subr.mxu0 0.0
      %389 = vmatpush1.xpose.msra.mxu0 %v356
      %390 = vmatprep.subr.mxu0 0.0
      %391 = vmatpush1.xpose.msra.mxu0 %v358
      %392 = vmatprep.subr.mxu0 0.0
      %393 = vmatpush1.xpose.msra.mxu0 %v360
      %394 = vmatprep.subr.mxu0 0.0
      %395 = vmatpush1.xpose.msra.mxu0 %v362
      %396 = vmatprep.subr.mxu0 0.0
      %397 = vmatpush1.xpose.msra.mxu0 %v364
      %398 = vmatprep.subr.mxu0 0.0
      %399 = vmatpush1.xpose.msra.mxu0 %v366
      %400 = vmatprep.subr.mxu0 0.0
      %401 = vmatpush1.xpose.msra.mxu0 %v368
      %402 = vmatprep.subr.mxu0 0.0
      %403 = vmatpush1.xpose.msra.mxu0 %v370
      %404 = vmatprep.subr.mxu0 0.0
      %405 = vmatpush1.xpose.msra.mxu0 %v372
      %406 = vmatprep.subr.mxu0 0.0
      %407 = vmatpush1.xpose.msra.mxu0 0.0
      %408 = vmatprep.subr.mxu0 0.0
      %409 = vmatpush1.xpose.msra.mxu0 0.0
      %410 = vmatprep.subr.mxu0 0.0
      %411 = vmatpush1.xpose.msra.mxu0 0.0
      %412 = vmatprep.subr.mxu0 0.0
      %413 = vmatpush1.xpose.msra.mxu0 0.0
      %414 = vmatprep.subr.mxu0 0.0
      %415 = vmatpush1.xpose.msra.mxu0 0.0
      %416 = vmatprep.subr.mxu0 0.0
      %417 = vmatpush1.xpose.msra.mxu0 0.0
      %418 = vmatprep.subr.mxu0 0.0
      %419 = vmatpush1.xpose.msra.mxu0 0.0
      %420 = vmatprep.subr.mxu0 0.0
      %421 = vmatpush1.xpose.msra.mxu0 0.0
      %422 = vmatprep.subr.mxu0 0.0
      %423 = vmatpush1.xpose.msra.mxu0 0.0
      %424 = vmatprep.subr.mxu0 0.0
      %425 = vmatpush1.xpose.msra.mxu0 0.0
      %426 = vmatprep.subr.mxu0 0.0
      %427 = vmatpush1.xpose.msra.mxu0 0.0
      %428 = vmatprep.subr.mxu0 0.0
      %429 = vmatpush1.xpose.msra.mxu0 0.0
      %430 = vmatprep.subr.mxu0 0.0
      %431 = vmatpush1.xpose.msra.mxu0 0.0
      %432 = vmatprep.subr.mxu0 0.0
      %433 = vmatpush1.xpose.msra.mxu0 0.0
      %434 = vmatprep.subr.mxu0 0.0
      %435 = vmatpush1.xpose.msra.mxu0 0.0
      %436 = vmatprep.subr.mxu0 0.0
      %437 = vmatpush1.xpose.msra.mxu0 0.0
      %438 = vmatprep.mubr.f32.mxu0 0.0
      %439 = vmatmul.mubr.f32.gmra.mrb[0].mxu0 %v295
      %v440 = vpop.f32.mrb[0].mxu0
      %v441 = vadd.f32 0.0, %v440
      %v442 = vpop.f32.mrb[0].mxu0
      %443 = vmatprep.mubr.f32.mxu0 0.0
      %444 = vmatmul.mubr.f32.gmra.mrb[0].mxu0 %v298
      %v445 = vpop.f32.mrb[0].mxu0
      %v446 = vadd.f32 0.0, %v445
      %v447 = vpop.f32.mrb[0].mxu0
      %448 = vmatprep.mubr.f32.mxu0 0.0
      %449 = vmatmul.mubr.f32.gmra.mrb[0].mxu0 %v301
      %v450 = vpop.f32.mrb[0].mxu0
      %v451 = vadd.f32 0.0, %v450
      %v452 = vpop.f32.mrb[0].mxu0
      %453 = vmatprep.mubr.f32.mxu0 0.0
      %454 = vmatmul.mubr.f32.gmra.mrb[0].mxu0 %v304
      %v455 = vpop.f32.mrb[0].mxu0
      %v456 = vadd.f32 0.0, %v455
      %v457 = vpop.f32.mrb[0].mxu0
      %458 = vmatprep.mubr.f32.mxu0 0.0
      %459 = vmatmul.mubr.f32.gmra.mrb[0].mxu0 %v307
      %v460 = vpop.f32.mrb[0].mxu0
      %v461 = vadd.f32 0.0, %v460
      %v462 = vpop.f32.mrb[0].mxu0
      %463 = vmatprep.mubr.f32.mxu0 0.0
      %464 = vmatmul.mubr.f32.gmra.mrb[0].mxu0 %v310
      %v465 = vpop.f32.mrb[0].mxu0
      %v466 = vadd.f32 0.0, %v465
      %v467 = vpop.f32.mrb[0].mxu0
      %468 = vmatprep.mubr.f32.mxu0 0.0
      %469 = vmatmul.mubr.f32.gmra.mrb[0].mxu0 %v313
      %v470 = vpop.f32.mrb[0].mxu0
      %v471 = vadd.f32 0.0, %v470
      %v472 = vpop.f32.mrb[0].mxu0
      %473 = vmatprep.mubr.f32.mxu0 0.0
      %474 = vmatmul.mubr.f32.gmra.mrb[0].mxu0 %v316
      %v475 = vpop.f32.mrb[0].mxu0
      %v476 = vadd.f32 0.0, %v475
      %v477 = vpop.f32.mrb[0].mxu0
      %478 = vmatprep.mubr.f32.mxu0 0.0
      %479 = vmatmul.mubr.f32.gmra.mrb[0].mxu0 %v319
      %v480 = vpop.f32.mrb[0].mxu0
      %v481 = vadd.f32 0.0, %v480
      %v482 = vpop.f32.mrb[0].mxu0
      %483 = vmatprep.mubr.f32.mxu0 0.0
      %484 = vmatmul.mubr.f32.gmra.mrb[0].mxu0 %v322
      %v485 = vpop.f32.mrb[0].mxu0
      %v486 = vadd.f32 0.0, %v485
      %v487 = vpop.f32.mrb[0].mxu0
      %488 = vmatprep.mubr.f32.mxu0 0.0
      %489 = vmatmul.mubr.f32.gmra.mrb[0].mxu0 %v325
      %v490 = vpop.f32.mrb[0].mxu0
      %v491 = vadd.f32 0.0, %v490
      %v492 = vpop.f32.mrb[0].mxu0
      %493 = vmatprep.mubr.f32.mxu0 0.0
      %494 = vmatmul.mubr.f32.gmra.mrb[0].mxu0 %v328
      %v495 = vpop.f32.mrb[0].mxu0
      %v496 = vadd.f32 0.0, %v495
      %v497 = vpop.f32.mrb[0].mxu0
      %498 = vmatprep.mubr.f32.mxu0 0.0
      %499 = vmatmul.mubr.f32.gmra.mrb[0].mxu0 %v331
      %v500 = vpop.f32.mrb[0].mxu0
      %v501 = vadd.f32 0.0, %v500
      %v502 = vpop.f32.mrb[0].mxu0
      %503 = vmatprep.mubr.f32.mxu0 0.0
      %504 = vmatmul.mubr.f32.gmra.mrb[0].mxu0 %v334
      %v505 = vpop.f32.mrb[0].mxu0
      %v506 = vadd.f32 0.0, %v505
      %v507 = vpop.f32.mrb[0].mxu0
      %508 = vmatprep.mubr.f32.mxu0 0.0
      %509 = vmatmul.mubr.f32.gmra.mrb[0].mxu0 %v337
      %v510 = vpop.f32.mrb[0].mxu0
      %v511 = vadd.f32 0.0, %v510
      %v512 = vpop.f32.mrb[0].mxu0
      %513 = vmatprep.mubr.f32.mxu0 0.0
      %514 = vmatmul.mubr.f32.gmra.mrb[0].mxu0 %v340
      %v515 = vpop.f32.mrb[0].mxu0
      %v516 = vadd.f32 0.0, %v515
      %v517 = vpop.f32.mrb[0].mxu0
      %518 = vdwg.mxu0
      %v520 = vsel %vm293, %v210, 0
      %v523 = vsel %vm293, %v211, 0
      %v526 = vsel %vm293, %v212, 0
      %v529 = vsel %vm293, %v213, 0
      %v532 = vsel %vm293, %v214, 0
      %v535 = vsel %vm293, %v215, 0
      %v538 = vsel %vm293, %v216, 0
      %v541 = vsel %vm293, %v217, 0
      %v544 = vsel %vm293, %v218, 0
      %v547 = vsel %vm293, %v219, 0
      %v550 = vsel %vm293, %v220, 0
      %v553 = vsel %vm293, %v221, 0
      %v556 = vsel %vm293, %v222, 0
      %v559 = vsel %vm293, %v223, 0
      %v562 = vsel %vm293, %v224, 0
      %v565 = vsel %vm293, %v225, 0
      %v567 = vsel %vm293, %v193, 0
      %v569 = vsel %vm293, %v194, 0
      %v571 = vsel %vm293, %v195, 0
      %v573 = vsel %vm293, %v196, 0
      %v575 = vsel %vm293, %v197, 0
      %v577 = vsel %vm293, %v198, 0
      %v579 = vsel %vm293, %v199, 0
      %v581 = vsel %vm293, %v200, 0
      %v583 = vsel %vm293, %v201, 0
      %v585 = vsel %vm293, %v202, 0
      %v587 = vsel %vm293, %v203, 0
      %v589 = vsel %vm293, %v204, 0
      %v591 = vsel %vm293, %v205, 0
      %v593 = vsel %vm293, %v206, 0
      %v595 = vsel %vm293, %v207, 0
      %v597 = vsel %vm293, %v208, 0
      %599 = vmatprep.subr.mxu0 0.0
      %600 = vmatpush1.xpose.msra.mxu0 %v567
      %601 = vmatprep.subr.mxu0 0.0
      %602 = vmatpush1.xpose.msra.mxu0 %v569
      %603 = vmatprep.subr.mxu0 0.0
      %604 = vmatpush1.xpose.msra.mxu0 %v571
      %605 = vmatprep.subr.mxu0 0.0
      %606 = vmatpush1.xpose.msra.mxu0 %v573
      %607 = vmatprep.subr.mxu0 0.0
      %608 = vmatpush1.xpose.msra.mxu0 %v575
      %609 = vmatprep.subr.mxu0 0.0
      %610 = vmatpush1.xpose.msra.mxu0 %v577
      %611 = vmatprep.subr.mxu0 0.0
      %612 = vmatpush1.xpose.msra.mxu0 %v579
      %613 = vmatprep.subr.mxu0 0.0
      %614 = vmatpush1.xpose.msra.mxu0 %v581
      %615 = vmatprep.subr.mxu0 0.0
      %616 = vmatpush1.xpose.msra.mxu0 %v583
      %617 = vmatprep.subr.mxu0 0.0
      %618 = vmatpush1.xpose.msra.mxu0 %v585
      %619 = vmatprep.subr.mxu0 0.0
      %620 = vmatpush1.xpose.msra.mxu0 %v587
      %621 = vmatprep.subr.mxu0 0.0
      %622 = vmatpush1.xpose.msra.mxu0 %v589
      %623 = vmatprep.subr.mxu0 0.0
      %624 = vmatpush1.xpose.msra.mxu0 %v591
      %625 = vmatprep.subr.mxu0 0.0
      %626 = vmatpush1.xpose.msra.mxu0 %v593
      %627 = vmatprep.subr.mxu0 0.0
      %628 = vmatpush1.xpose.msra.mxu0 %v595
      %629 = vmatprep.subr.mxu0 0.0
      %630 = vmatpush1.xpose.msra.mxu0 %v597
      %631 = vmatprep.subr.mxu0 0.0
      %632 = vmatpush1.xpose.msra.mxu0 0.0
      %633 = vmatprep.subr.mxu0 0.0
      %634 = vmatpush1.xpose.msra.mxu0 0.0
      %635 = vmatprep.subr.mxu0 0.0
      %636 = vmatpush1.xpose.msra.mxu0 0.0
      %637 = vmatprep.subr.mxu0 0.0
      %638 = vmatpush1.xpose.msra.mxu0 0.0
      %639 = vmatprep.subr.mxu0 0.0
      %640 = vmatpush1.xpose.msra.mxu0 0.0
      %641 = vmatprep.subr.mxu0 0.0
      %642 = vmatpush1.xpose.msra.mxu0 0.0
      %643 = vmatprep.subr.mxu0 0.0
      %644 = vmatpush1.xpose.msra.mxu0 0.0
      %645 = vmatprep.subr.mxu0 0.0
      %646 = vmatpush1.xpose.msra.mxu0 0.0
      %647 = vmatprep.subr.mxu0 0.0
      %648 = vmatpush1.xpose.msra.mxu0 0.0
      %649 = vmatprep.subr.mxu0 0.0
      %650 = vmatpush1.xpose.msra.mxu0 0.0
      %651 = vmatprep.subr.mxu0 0.0
      %652 = vmatpush1.xpose.msra.mxu0 0.0
      %653 = vmatprep.subr.mxu0 0.0
      %654 = vmatpush1.xpose.msra.mxu0 0.0
      %655 = vmatprep.subr.mxu0 0.0
      %656 = vmatpush1.xpose.msra.mxu0 0.0
      %657 = vmatprep.subr.mxu0 0.0
      %658 = vmatpush1.xpose.msra.mxu0 0.0
      %659 = vmatprep.subr.mxu0 0.0
      %660 = vmatpush1.xpose.msra.mxu0 0.0
      %661 = vmatprep.subr.mxu0 0.0
      %662 = vmatpush1.xpose.msra.mxu0 0.0
      %663 = vmatprep.mubr.f32.mxu0 0.0
      %664 = vmatmul.mubr.f32.gmra.mrb[0].mxu0 %v520
      %v665 = vpop.f32.mrb[0].mxu0
      %v666 = vadd.f32 %v441, %v665
      %v667 = vpop.f32.mrb[0].mxu0
      %668 = vmatprep.mubr.f32.mxu0 0.0
      %669 = vmatmul.mubr.f32.gmra.mrb[0].mxu0 %v523
      %v670 = vpop.f32.mrb[0].mxu0
      %v671 = vadd.f32 %v446, %v670
      %v672 = vpop.f32.mrb[0].mxu0
      %673 = vmatprep.mubr.f32.mxu0 0.0
      %674 = vmatmul.mubr.f32.gmra.mrb[0].mxu0 %v526
      %v675 = vpop.f32.mrb[0].mxu0
      %v676 = vadd.f32 %v451, %v675
      %v677 = vpop.f32.mrb[0].mxu0
      %678 = vmatprep.mubr.f32.mxu0 0.0
      %679 = vmatmul.mubr.f32.gmra.mrb[0].mxu0 %v529
      %v680 = vpop.f32.mrb[0].mxu0
      %v681 = vadd.f32 %v456, %v680
      %v682 = vpop.f32.mrb[0].mxu0
      %683 = vmatprep.mubr.f32.mxu0 0.0
      %684 = vmatmul.mubr.f32.gmra.mrb[0].mxu0 %v532
      %v685 = vpop.f32.mrb[0].mxu0
      %v686 = vadd.f32 %v461, %v685
      %v687 = vpop.f32.mrb[0].mxu0
      %688 = vmatprep.mubr.f32.mxu0 0.0
      %689 = vmatmul.mubr.f32.gmra.mrb[0].mxu0 %v535
      %v690 = vpop.f32.mrb[0].mxu0
      %v691 = vadd.f32 %v466, %v690
      %v692 = vpop.f32.mrb[0].mxu0
      %693 = vmatprep.mubr.f32.mxu0 0.0
      %694 = vmatmul.mubr.f32.gmra.mrb[0].mxu0 %v538
      %v695 = vpop.f32.mrb[0].mxu0
      %v696 = vadd.f32 %v471, %v695
      %v697 = vpop.f32.mrb[0].mxu0
      %698 = vmatprep.mubr.f32.mxu0 0.0
      %699 = vmatmul.mubr.f32.gmra.mrb[0].mxu0 %v541
      %v700 = vpop.f32.mrb[0].mxu0
      %v701 = vadd.f32 %v476, %v700
      %v702 = vpop.f32.mrb[0].mxu0
      %703 = vmatprep.mubr.f32.mxu0 0.0
      %704 = vmatmul.mubr.f32.gmra.mrb[0].mxu0 %v544
      %v705 = vpop.f32.mrb[0].mxu0
      %v706 = vadd.f32 %v481, %v705
      %v707 = vpop.f32.mrb[0].mxu0
      %708 = vmatprep.mubr.f32.mxu0 0.0
      %709 = vmatmul.mubr.f32.gmra.mrb[0].mxu0 %v547
      %v710 = vpop.f32.mrb[0].mxu0
      %v711 = vadd.f32 %v486, %v710
      %v712 = vpop.f32.mrb[0].mxu0
      %713 = vmatprep.mubr.f32.mxu0 0.0
      %714 = vmatmul.mubr.f32.gmra.mrb[0].mxu0 %v550
      %v715 = vpop.f32.mrb[0].mxu0
      %v716 = vadd.f32 %v491, %v715
      %v717 = vpop.f32.mrb[0].mxu0
      %718 = vmatprep.mubr.f32.mxu0 0.0
      %719 = vmatmul.mubr.f32.gmra.mrb[0].mxu0 %v553
      %v720 = vpop.f32.mrb[0].mxu0
      %v721 = vadd.f32 %v496, %v720
      %v722 = vpop.f32.mrb[0].mxu0
      %723 = vmatprep.mubr.f32.mxu0 0.0
      %724 = vmatmul.mubr.f32.gmra.mrb[0].mxu0 %v556
      %v725 = vpop.f32.mrb[0].mxu0
      %v726 = vadd.f32 %v501, %v725
      %v727 = vpop.f32.mrb[0].mxu0
      %728 = vmatprep.mubr.f32.mxu0 0.0
      %729 = vmatmul.mubr.f32.gmra.mrb[0].mxu0 %v559
      %v730 = vpop.f32.mrb[0].mxu0
      %v731 = vadd.f32 %v506, %v730
      %v732 = vpop.f32.mrb[0].mxu0
      %733 = vmatprep.mubr.f32.mxu0 0.0
      %734 = vmatmul.mubr.f32.gmra.mrb[0].mxu0 %v562
      %v735 = vpop.f32.mrb[0].mxu0
      %v736 = vadd.f32 %v511, %v735
      %v737 = vpop.f32.mrb[0].mxu0
      %738 = vmatprep.mubr.f32.mxu0 0.0
      %739 = vmatmul.mubr.f32.gmra.mrb[0].mxu0 %v565
      %v740 = vpop.f32.mrb[0].mxu0
      %v741 = vadd.f32 %v516, %v740
      %v742 = vpop.f32.mrb[0].mxu0
      %743 = vdwg.mxu0
      %v744 = vmax.f32 %v666, 0.0
      %v745 = vmax.f32 %v671, 0.0
      %v746 = vmax.f32 %v676, 0.0
      %v747 = vmax.f32 %v681, 0.0
      %v748 = vmax.f32 %v686, 0.0
      %v749 = vmax.f32 %v691, 0.0
      %v750 = vmax.f32 %v696, 0.0
      %v751 = vmax.f32 %v701, 0.0
      %v752 = vmax.f32 %v706, 0.0
      %v753 = vmax.f32 %v711, 0.0
      %v754 = vmax.f32 %v716, 0.0
      %v755 = vmax.f32 %v721, 0.0
      %v756 = vmax.f32 %v726, 0.0
      %v757 = vmax.f32 %v731, 0.0
      %v758 = vmax.f32 %v736, 0.0
      %v759 = vmax.f32 %v741, 0.0
      %760 = vst [vmem:[%s190] sm:$0xff] %v744
      %761 = vst [vmem:[%s190 + $0x8] sm:$0xff] %v745
      %762 = vst [vmem:[%s190 + $0x10] sm:$0xff] %v746
      %763 = vst [vmem:[%s190 + $0x18] sm:$0xff] %v747
      %764 = vst [vmem:[%s190 + $0x20] sm:$0xff] %v748
      %765 = vst [vmem:[%s190 + $0x28] sm:$0xff] %v749
      %766 = vst [vmem:[%s190 + $0x30] sm:$0xff] %v750
      %767 = vst [vmem:[%s190 + $0x38] sm:$0xff] %v751
      %768 = vst [vmem:[%s190 + $0x40] sm:$0xff] %v752
      %769 = vst [vmem:[%s190 + $0x48] sm:$0xff] %v753
      %770 = vst [vmem:[%s190 + $0x50] sm:$0xff] %v754
      %771 = vst [vmem:[%s190 + $0x58] sm:$0xff] %v755
      %772 = vst [vmem:[%s190 + $0x60] sm:$0xff] %v756
      %773 = vst [vmem:[%s190 + $0x68] sm:$0xff] %v757
      %774 = vst [vmem:[%s190 + $0x70] sm:$0xff] %v758
      %775 = vst [vmem:[%s190 + $0x78] sm:$0xff] %v759
      %p776 = scmp.lt.s32.totalorder %s18, 1
      %s777 = scalar_select %p776, %s18, 1
      %p778 = scmp.lt.s32.totalorder %s19, 0
      %s779 = scalar_select %p778, %s19, 0
      %s780 = smul.addr %s777, 16
      %s781 = sadd.s32 %s779, %s780
      %s782 = smul.addr %s781, 8
      %s783 = scalar_lea.vmem %s3, %s782
      // Predicated region
      $region33: #{tpu_custom_call.1} parent=31 // pred_check
        %p784 = pneg %p114
      $region34: #{tpu_custom_call.1} parent=31 // pred_check_branch
        %786 = sbr.rel (%p784) target = $region36
      $region35: #{tpu_custom_call.1} parent=31 // pred_region
        _
      $region36: #{tpu_custom_call.1} parent=31 // pred_fallthru
        _
    $region32: #{tpu_custom_call.1} parent=5 // pred_fallthru
      _
    %p787 = scmp.le.s32.totalorder 2, %s9
    // Predicated region
    $region37: #{tpu_custom_call.1} parent=5 // pred_check
      %p788 = pneg %p787
    $region38: #{tpu_custom_call.1} parent=5 // pred_check_branch
      %790 = sbr.rel (%p788) target = $region40
    $region39: #{tpu_custom_call.1} parent=5 // pred_region
      %s791 = ssub.s32 %s9, 2
      // Predicated region
      $region41: #{tpu_custom_call.1} parent=39 // pred_check
        %p792 = pneg %p120
      $region42: #{tpu_custom_call.1} parent=39 // pred_check_branch
        %794 = sbr.rel (%p792) target = $region44
      $region43: #{tpu_custom_call.1} parent=39 // pred_region
        %p795 = scmp.lt.s32.totalorder %s20, 1
        %s796 = scalar_select %p795, %s20, 1
        %p797 = scmp.lt.s32.totalorder %s21, 0
        %s798 = scalar_select %p797, %s21, 0
        %s799 = smul.addr %s796, 16
        %s800 = sadd.s32 %s798, %s799
        %s801 = smul.addr %s800, 8
        %s802 = scalar_lea.vmem %s3, %s801
      $region44: #{tpu_custom_call.1} parent=39 // pred_fallthru
        _
    $region40: #{tpu_custom_call.1} parent=5 // pred_fallthru
      _
  $region6: #{tpu_custom_call.1} parent=0 // loop_footer
    %s13 = sadd.s32 1, %s9
  $region7: #{tpu_custom_call.1} parent=0 // loop_footer_branch
    %8 = sbr.rel target = $region3
  $region8: #{tpu_custom_call.1} parent=0 // loop_exit
    _

</llo_original>
